<compile_context>
chip_gen: v6e
topology: v6e:2x2x1
jax: 0.10.0
libtpu: 0.0.40
codegen_flags: <defaults>
</compile_context>

<pallas_src>
import jax
import jax.numpy as jnp
from jax.experimental import pallas as pl
from jax.experimental.pallas import tpu as pltpu


def mlp_kernel(x_ref, w1_ref, b1_ref, w2_ref, b2_ref, o_ref):
    # x_ref : (tb, 5) f32 VMEM   (batch on sublanes, features on lanes - native layout)
    # w1_ref: (5, 4)  f32 VMEM   (fc1 weight, already transposed to (in, out))
    # b1_ref: (1, 4)  f32 VMEM
    # w2_ref: (4, 3)  f32 VMEM   (fc2 weight, (in, out))
    # b2_ref: (1, 3)  f32 VMEM
    # o_ref : (tb, 3) f32 VMEM
    x = x_ref[...]
    h = jnp.dot(x, w1_ref[...], preferred_element_type=jnp.float32) + b1_ref[...]
    h = jnp.maximum(h, 0.0)
    y = jnp.dot(h, w2_ref[...], preferred_element_type=jnp.float32) + b2_ref[...]
    o_ref[...] = y.astype(o_ref.dtype)


def simple_model_forward(x, w1, b1, w2, b2, *, tb=2048):
    """SimpleModel.forward.

    x : [B, 5] float; w1: [4, 5]; b1: [4]; w2: [3, 4]; b2: [3]  (PyTorch Linear layout).
    Returns [B, 3] float32.

    tb is the batch tile (multiple of 8). 2048-8192 is the sweet spot: large
    enough to amortize the ~0.35 us per-grid-step overhead, small enough that
    the lane-padded tile (~tb * 512 B for x, same for out, double-buffered)
    stays far below the VMEM scoped limit on v5e/v6e/v7x.
    """
    B = x.shape[0]
    x = x.astype(jnp.float32)

    # One-time tiny parameter relayout (20 + 12 elements): (out, in) -> (in, out),
    # biases as broadcastable row vectors.  Negligible vs. activation traffic.
    w1t = jnp.transpose(w1).astype(jnp.float32)      # (5, 4)
    w2t = jnp.transpose(w2).astype(jnp.float32)      # (4, 3)
    b1r = b1.reshape(1, 4).astype(jnp.float32)
    b2r = b2.reshape(1, 3).astype(jnp.float32)

    if B <= tb:
        # Small-batch fast path: single gridless block (block == full array dims,
        # so no (8,128) divisibility requirement and no padding / slicing).
        return pl.pallas_call(
            mlp_kernel,
            out_shape=jax.ShapeDtypeStruct((B, 3), jnp.float32),
        )(x, w1t, b1r, w2t, b2r)

    # Tiled path: B > tb  =>  n_tiles >= 2, so the "parallel" grid axis always
    # has work for both TensorCores on v7x (single-TC v5e/v6e just loop).
    n_tiles = pl.cdiv(B, tb)
    b_pad = n_tiles * tb
    if b_pad != B:
        # Pad the batch tail; padded rows compute relu(b1) @ w2t + b2 (garbage)
        # which is sliced off below.  Wasted work, not incorrect.
        x = jnp.pad(x, ((0, b_pad - B), (0, 0)))

    out = pl.pallas_call(
        mlp_kernel,
        out_shape=jax.ShapeDtypeStruct((b_pad, 3), jnp.float32),
        grid=(n_tiles,),
        in_specs=[
            # Activations: batch-tiled in their native (B, 5) row-major layout
            # (each tile is one contiguous 20*tb-byte HBM read).
            pl.BlockSpec((tb, 5), lambda i: (i, 0)),
            # Parameters: whole (tiny) arrays, resident in VMEM, constant index
            # map -> fetched once, reused across all grid steps.
            pl.BlockSpec((5, 4), lambda i: (0, 0)),
            pl.BlockSpec((1, 4), lambda i: (0, 0)),
            pl.BlockSpec((4, 3), lambda i: (0, 0)),
            pl.BlockSpec((1, 3), lambda i: (0, 0)),
        ],
        out_specs=pl.BlockSpec((tb, 3), lambda i: (i, 0)),
        compiler_params=pltpu.CompilerParams(
            dimension_semantics=("parallel",),
        ),
    )(x, w1t, b1r, w2t, b2r)

    return out[:B] if b_pad != B else out


def init_params(key):
    """Deterministic parameter init matching nn.Linear shapes (Kaiming-uniform-ish)."""
    k1, k2, k3, k4 = jax.random.split(key, 4)
    bound1 = 1.0 / jnp.sqrt(5.0)
    bound2 = 1.0 / jnp.sqrt(4.0)
    w1 = jax.random.uniform(k1, (4, 5), jnp.float32, -bound1, bound1)
    b1 = jax.random.uniform(k2, (4,), jnp.float32, -bound1, bound1)
    w2 = jax.random.uniform(k3, (3, 4), jnp.float32, -bound2, bound2)
    b2 = jax.random.uniform(k4, (3,), jnp.float32, -bound2, bound2)
    return w1, b1, w2, b2


if __name__ == "__main__":
    key = jax.random.PRNGKey(0)
    k_x, k_x2, k_p = jax.random.split(key, 3)
    w1, b1, w2, b2 = init_params(k_p)

    hi = jax.lax.Precision.HIGHEST

    def ref_forward(xv):
        h = jnp.maximum(jnp.dot(xv, w1.T, precision=hi) + b1, 0.0)
        return jnp.dot(h, w2.T, precision=hi) + b2

    # 1) Small batch -> single-block gridless path.
    B = 200
    x = jax.random.normal(k_x, (B, 5), dtype=jnp.float32)
    out = jax.block_until_ready(simple_model_forward(x, w1, b1, w2, b2))
    assert out.shape == (B, 3)
    assert jnp.allclose(out, ref_forward(x), atol=1e-4, rtol=1e-4)

    # 2) Larger batch, not a multiple of the tile -> tiled, parallel-grid path
    #    with tail padding (3 grid steps at tb=2048).
    B2 = 4100
    x2 = jax.random.normal(k_x2, (B2, 5), dtype=jnp.float32)
    out2 = jax.block_until_ready(simple_model_forward(x2, w1, b1, w2, b2, tb=2048))
    assert out2.shape == (B2, 3)
    assert jnp.allclose(out2, ref_forward(x2), atol=1e-4, rtol=1e-4)

    print("KERNEL_OK")
</pallas_src>

<mosaic_0001>
module attributes {stable_mosaic.version = 11 : i64} {
  func.func @mlp_kernel(%arg0: memref<200x5xf32, #tpu.memory_space<vmem>>, %arg1: memref<5x4xf32, #tpu.memory_space<vmem>>, %arg2: memref<1x4xf32, #tpu.memory_space<vmem>>, %arg3: memref<4x3xf32, #tpu.memory_space<vmem>>, %arg4: memref<1x3xf32, #tpu.memory_space<vmem>>, %arg5: memref<200x3xf32, #tpu.memory_space<vmem>>) attributes {dimension_semantics = [], scalar_prefetch = 0 : i64, scratch_operands = 0 : i64, tpu.core_type = #tpu.core_type<tc>} {
    %c0 = arith.constant 0 : index
    %c0_0 = arith.constant 0 : index
    %0 = vector.load %arg0[%c0, %c0_0] : memref<200x5xf32, #tpu.memory_space<vmem>>, vector<200x5xf32>
    %c0_1 = arith.constant 0 : index
    %c0_2 = arith.constant 0 : index
    %1 = vector.load %arg1[%c0_1, %c0_2] : memref<5x4xf32, #tpu.memory_space<vmem>>, vector<5x4xf32>
    %cst = arith.constant dense<0.000000e+00> : vector<200x4xf32>
    %2 = tpu.matmul %0, %1, %cst {dimension_numbers = #tpu.dot_dimension_numbers<[1], [0], [0], [1], [0, 0, 1, 1], [], []>} : vector<200x5xf32>, vector<5x4xf32>, vector<200x4xf32> -> vector<200x4xf32>
    %c0_3 = arith.constant 0 : index
    %c0_4 = arith.constant 0 : index
    %3 = vector.load %arg2[%c0_3, %c0_4] : memref<1x4xf32, #tpu.memory_space<vmem>>, vector<1x4xf32>
    %4 = vector.broadcast %3 : vector<1x4xf32> to vector<200x4xf32>
    %5 = arith.addf %2, %4 : vector<200x4xf32>
    %cst_5 = arith.constant 0.000000e+00 : f32
    %6 = vector.broadcast %cst_5 : f32 to vector<200x4xf32>
    %7 = arith.maximumf %5, %6 : vector<200x4xf32>
    %c0_6 = arith.constant 0 : index
    %c0_7 = arith.constant 0 : index
    %8 = vector.load %arg3[%c0_6, %c0_7] : memref<4x3xf32, #tpu.memory_space<vmem>>, vector<4x3xf32>
    %cst_8 = arith.constant dense<0.000000e+00> : vector<200x3xf32>
    %9 = tpu.matmul %7, %8, %cst_8 {dimension_numbers = #tpu.dot_dimension_numbers<[1], [0], [0], [1], [0, 0, 1, 1], [], []>} : vector<200x4xf32>, vector<4x3xf32>, vector<200x3xf32> -> vector<200x3xf32>
    %c0_9 = arith.constant 0 : index
    %c0_10 = arith.constant 0 : index
    %10 = vector.load %arg4[%c0_9, %c0_10] : memref<1x3xf32, #tpu.memory_space<vmem>>, vector<1x3xf32>
    %11 = vector.broadcast %10 : vector<1x3xf32> to vector<200x3xf32>
    %12 = arith.addf %9, %11 : vector<200x3xf32>
    %c0_11 = arith.constant 0 : index
    %c0_12 = arith.constant 0 : index
    %13 = vector.load %arg5[%c0_11, %c0_12] : memref<200x3xf32, #tpu.memory_space<vmem>>, vector<200x3xf32>
    tpu.vector_store %arg5[%c0_11, %c0_12], %12 {strides = array<i32>} : memref<200x3xf32, #tpu.memory_space<vmem>>, vector<200x3xf32>,
    return
  }
}

</mosaic_0001>

<llo_original>
// kernel: tpu_custom_call.1
$region0: #{tpu_custom_call.1}
  #allocation0 [shape = 'u32[]', space=smem, size = 0x4, offset = 0x4, fixed_abs, tag = 'smem constant byte address 0x4 - core index']
  #allocation1 [shape = 'u32[144,128]{1,0:T(1,128)}', space=vmem, size = 0x12000, scoped, tag = 'internal scratch']
  %s0 = inlined_call_operand.vmem [shape: f32[200,5], index: 0, kind: input, shape index: {}]
  %s1 = inlined_call_operand.vmem [shape: f32[5,4], index: 1, kind: input, shape index: {}]
  %s2 = inlined_call_operand.vmem [shape: f32[1,4], index: 2, kind: input, shape index: {}]
  %s3 = inlined_call_operand.vmem [shape: f32[4,3], index: 3, kind: input, shape index: {}]
  %s4 = inlined_call_operand.vmem [shape: f32[1,3], index: 4, kind: input, shape index: {}]
  %s5 = inlined_call_operand.vmem [shape: f32[200,3], index: 5, kind: output, shape index: {}]
  %s6 = sld [smem:[#allocation0]]
  $region30: #{tpu_custom_call.1} parent=0
    _
  %s8 = ssub.s32 1, %s6
  %s9 = scalar_select 0, %s8, %s6
  // Predicated region
  $region2: #{tpu_custom_call.1} parent=0 // pred_check
    _
  $region3: #{tpu_custom_call.1} parent=0 // pred_check_branch
    %11 = sbr.rel (0) target = $region5
  $region4: #{tpu_custom_call.1} parent=0 // pred_region
    _
  $region5: #{tpu_custom_call.1} parent=0 // pred_fallthru
    _
  // Predicated region
  $region6: #{tpu_custom_call.1} parent=0 // pred_check
    _
  $region7: #{tpu_custom_call.1} parent=0 // pred_check_branch
    %13 = sbr.rel (0) target = $region9
  $region8: #{tpu_custom_call.1} parent=0 // pred_region
    _
  $region9: #{tpu_custom_call.1} parent=0 // pred_fallthru
    _
  // Predicated region
  $region10: #{tpu_custom_call.1} parent=0 // pred_check
    _
  $region11: #{tpu_custom_call.1} parent=0 // pred_check_branch
    %15 = sbr.rel (0) target = $region13
  $region12: #{tpu_custom_call.1} parent=0 // pred_region
    _
  $region13: #{tpu_custom_call.1} parent=0 // pred_fallthru
    _
  // Predicated region
  $region14: #{tpu_custom_call.1} parent=0 // pred_check
    _
  $region15: #{tpu_custom_call.1} parent=0 // pred_check_branch
    %17 = sbr.rel (0) target = $region17
  $region16: #{tpu_custom_call.1} parent=0 // pred_region
    _
  $region17: #{tpu_custom_call.1} parent=0 // pred_fallthru
    _
  // Predicated region
  $region18: #{tpu_custom_call.1} parent=0 // pred_check
    _
  $region19: #{tpu_custom_call.1} parent=0 // pred_check_branch
    %19 = sbr.rel (0) target = $region21
  $region20: #{tpu_custom_call.1} parent=0 // pred_region
    _
  $region21: #{tpu_custom_call.1} parent=0 // pred_fallthru
    _
  %v20 = vld [vmem:[%s0] sm:$0xff]
  %v21 = vld [vmem:[%s0 + $0x8] sm:$0xff]
  %v22 = vld [vmem:[%s0 + $0x10] sm:$0xff]
  %v23 = vld [vmem:[%s0 + $0x18] sm:$0xff]
  %v24 = vld [vmem:[%s0 + $0x20] sm:$0xff]
  %v25 = vld [vmem:[%s0 + $0x28] sm:$0xff]
  %v26 = vld [vmem:[%s0 + $0x30] sm:$0xff]
  %v27 = vld [vmem:[%s0 + $0x38] sm:$0xff]
  %v28 = vld [vmem:[%s0 + $0x40] sm:$0xff]
  %v29 = vld [vmem:[%s0 + $0x48] sm:$0xff]
  %v30 = vld [vmem:[%s0 + $0x50] sm:$0xff]
  %v31 = vld [vmem:[%s0 + $0x58] sm:$0xff]
  %v32 = vld [vmem:[%s0 + $0x60] sm:$0xff]
  %v33 = vld [vmem:[%s0 + $0x68] sm:$0xff]
  %v34 = vld [vmem:[%s0 + $0x70] sm:$0xff]
  %v35 = vld [vmem:[%s0 + $0x78] sm:$0xff]
  %v36 = vld [vmem:[%s0 + $0x80] sm:$0xff]
  %v37 = vld [vmem:[%s0 + $0x88] sm:$0xff]
  %v38 = vld [vmem:[%s0 + $0x90] sm:$0xff]
  %v39 = vld [vmem:[%s0 + $0x98] sm:$0xff]
  %v40 = vld [vmem:[%s0 + $0xa0] sm:$0xff]
  %v41 = vld [vmem:[%s0 + $0xa8] sm:$0xff]
  %v42 = vld [vmem:[%s0 + $0xb0] sm:$0xff]
  %v43 = vld [vmem:[%s0 + $0xb8] sm:$0xff]
  %v44 = vld [vmem:[%s0 + $0xc0] sm:$0xff]
  %v45 = vld [vmem:[%s1] sm:$0x1f]
  %v46 = vld [vmem:[%s2] sm:$0x1]
  %v48 = vlaneseq
  %v49 = vshrl.u32 %v48, 7
  %v50 = vsub.s32 0, %v49
  %v51 = vrot.slane %v46, %v50
  %vm53 = vcmask 39936
  %v55 = vsel %vm53, %v20, 0
  %v58 = vsel %vm53, %v21, 0
  %v61 = vsel %vm53, %v22, 0
  %v64 = vsel %vm53, %v23, 0
  %v67 = vsel %vm53, %v24, 0
  %v70 = vsel %vm53, %v25, 0
  %v73 = vsel %vm53, %v26, 0
  %v76 = vsel %vm53, %v27, 0
  %v79 = vsel %vm53, %v28, 0
  %v82 = vsel %vm53, %v29, 0
  %v85 = vsel %vm53, %v30, 0
  %v88 = vsel %vm53, %v31, 0
  %v91 = vsel %vm53, %v32, 0
  %v94 = vsel %vm53, %v33, 0
  %v97 = vsel %vm53, %v34, 0
  %v100 = vsel %vm53, %v35, 0
  %v103 = vsel %vm53, %v36, 0
  %v106 = vsel %vm53, %v37, 0
  %v109 = vsel %vm53, %v38, 0
  %v112 = vsel %vm53, %v39, 0
  %v115 = vsel %vm53, %v40, 0
  %v118 = vsel %vm53, %v41, 0
  %v121 = vsel %vm53, %v42, 0
  %v124 = vsel %vm53, %v43, 0
  %v127 = vsel %vm53, %v44, 0
  %vm129 = vcmask 1044480
  %v131 = vsel %vm129, %v45, 0
  %133 = vmatprep.subr.mxu0 0.0
  %134 = vmatpush1.msra.mxu0 0.0
  %135 = vmatprep.subr.mxu0 0.0
  %136 = vmatpush1.msra.mxu0 0.0
  %137 = vmatprep.subr.mxu0 0.0
  %138 = vmatpush1.msra.mxu0 0.0
  %139 = vmatprep.subr.mxu0 0.0
  %140 = vmatpush1.msra.mxu0 0.0
  %141 = vmatprep.subr.mxu0 0.0
  %142 = vmatpush1.msra.mxu0 0.0
  %143 = vmatprep.subr.mxu0 0.0
  %144 = vmatpush1.msra.mxu0 0.0
  %145 = vmatprep.subr.mxu0 0.0
  %146 = vmatpush1.msra.mxu0 0.0
  %147 = vmatprep.subr.mxu0 0.0
  %148 = vmatpush1.msra.mxu0 0.0
  %149 = vmatprep.subr.mxu0 0.0
  %150 = vmatpush1.msra.mxu0 0.0
  %151 = vmatprep.subr.mxu0 0.0
  %152 = vmatpush1.msra.mxu0 0.0
  %153 = vmatprep.subr.mxu0 0.0
  %154 = vmatpush1.msra.mxu0 0.0
  %155 = vmatprep.subr.mxu0 0.0
  %156 = vmatpush1.msra.mxu0 0.0
  %157 = vmatprep.subr.mxu0 0.0
  %158 = vmatpush1.msra.mxu0 0.0
  %159 = vmatprep.subr.mxu0 0.0
  %160 = vmatpush1.msra.mxu0 0.0
  %161 = vmatprep.subr.mxu0 0.0
  %162 = vmatpush1.msra.mxu0 0.0
  %163 = vmatprep.subr.mxu0 0.0
  %164 = vmatpush1.msra.mxu0 %v131
  %165 = vmatprep.subr.mxu0 0.0
  %166 = vmatpush2.msra.mxu0 0.0
  %167 = vmatprep.subr.mxu0 0.0
  %168 = vmatpush2.msra.mxu0 0.0
  %169 = vmatprep.subr.mxu0 0.0
  %170 = vmatpush2.msra.mxu0 0.0
  %171 = vmatprep.subr.mxu0 0.0
  %172 = vmatpush2.msra.mxu0 0.0
  %173 = vmatprep.subr.mxu0 0.0
  %174 = vmatpush2.msra.mxu0 0.0
  %175 = vmatprep.subr.mxu0 0.0
  %176 = vmatpush2.msra.mxu0 0.0
  %177 = vmatprep.subr.mxu0 0.0
  %178 = vmatpush2.msra.mxu0 0.0
  %179 = vmatprep.subr.mxu0 0.0
  %180 = vmatpush2.msra.mxu0 0.0
  %181 = vmatprep.subr.mxu0 0.0
  %182 = vmatpush2.msra.mxu0 0.0
  %183 = vmatprep.subr.mxu0 0.0
  %184 = vmatpush2.msra.mxu0 0.0
  %185 = vmatprep.subr.mxu0 0.0
  %186 = vmatpush2.msra.mxu0 0.0
  %187 = vmatprep.subr.mxu0 0.0
  %188 = vmatpush2.msra.mxu0 0.0
  %189 = vmatprep.subr.mxu0 0.0
  %190 = vmatpush2.msra.mxu0 0.0
  %191 = vmatprep.subr.mxu0 0.0
  %192 = vmatpush2.msra.mxu0 0.0
  %193 = vmatprep.subr.mxu0 0.0
  %194 = vmatpush2.msra.mxu0 0.0
  %195 = vmatprep.subr.mxu0 0.0
  %196 = vmatpush2.msra.mxu0 0.0
  %197 = vmatprep.mubr.f32.mxu0 0.0
  %198 = vmatmul.mubr.f32.gmra.mxu0 %v55
  %v199 = vpop.f32.mrf.mxu0
  %v200 = vadd.f32 %v51, %v199
  %v201 = vpop.f32.mrf.mxu0
  %202 = vmatprep.mubr.f32.mxu0 0.0
  %203 = vmatmul.mubr.f32.gmra.mxu0 %v58
  %v204 = vpop.f32.mrf.mxu0
  %v205 = vadd.f32 %v51, %v204
  %v206 = vpop.f32.mrf.mxu0
  %207 = vmatprep.mubr.f32.mxu0 0.0
  %208 = vmatmul.mubr.f32.gmra.mxu0 %v61
  %v209 = vpop.f32.mrf.mxu0
  %v210 = vadd.f32 %v51, %v209
  %v211 = vpop.f32.mrf.mxu0
  %212 = vmatprep.mubr.f32.mxu0 0.0
  %213 = vmatmul.mubr.f32.gmra.mxu0 %v64
  %v214 = vpop.f32.mrf.mxu0
  %v215 = vadd.f32 %v51, %v214
  %v216 = vpop.f32.mrf.mxu0
  %217 = vmatprep.mubr.f32.mxu0 0.0
  %218 = vmatmul.mubr.f32.gmra.mxu0 %v67
  %v219 = vpop.f32.mrf.mxu0
  %v220 = vadd.f32 %v51, %v219
  %v221 = vpop.f32.mrf.mxu0
  %222 = vmatprep.mubr.f32.mxu0 0.0
  %223 = vmatmul.mubr.f32.gmra.mxu0 %v70
  %v224 = vpop.f32.mrf.mxu0
  %v225 = vadd.f32 %v51, %v224
  %v226 = vpop.f32.mrf.mxu0
  %227 = vmatprep.mubr.f32.mxu0 0.0
  %228 = vmatmul.mubr.f32.gmra.mxu0 %v73
  %v229 = vpop.f32.mrf.mxu0
  %v230 = vadd.f32 %v51, %v229
  %v231 = vpop.f32.mrf.mxu0
  %232 = vmatprep.mubr.f32.mxu0 0.0
  %233 = vmatmul.mubr.f32.gmra.mxu0 %v76
  %v234 = vpop.f32.mrf.mxu0
  %v235 = vadd.f32 %v51, %v234
  %v236 = vpop.f32.mrf.mxu0
  %237 = vmatprep.mubr.f32.mxu0 0.0
  %238 = vmatmul.mubr.f32.gmra.mxu0 %v79
  %v239 = vpop.f32.mrf.mxu0
  %v240 = vadd.f32 %v51, %v239
  %v241 = vpop.f32.mrf.mxu0
  %242 = vmatprep.mubr.f32.mxu0 0.0
  %243 = vmatmul.mubr.f32.gmra.mxu0 %v82
  %v244 = vpop.f32.mrf.mxu0
  %v245 = vadd.f32 %v51, %v244
  %v246 = vpop.f32.mrf.mxu0
  %247 = vmatprep.mubr.f32.mxu0 0.0
  %248 = vmatmul.mubr.f32.gmra.mxu0 %v85
  %v249 = vpop.f32.mrf.mxu0
  %v250 = vadd.f32 %v51, %v249
  %v251 = vpop.f32.mrf.mxu0
  %252 = vmatprep.mubr.f32.mxu0 0.0
  %253 = vmatmul.mubr.f32.gmra.mxu0 %v88
  %v254 = vpop.f32.mrf.mxu0
  %v255 = vadd.f32 %v51, %v254
  %v256 = vpop.f32.mrf.mxu0
  %257 = vmatprep.mubr.f32.mxu0 0.0
  %258 = vmatmul.mubr.f32.gmra.mxu0 %v91
  %v259 = vpop.f32.mrf.mxu0
  %v260 = vadd.f32 %v51, %v259
  %v261 = vpop.f32.mrf.mxu0
  %262 = vmatprep.mubr.f32.mxu0 0.0
  %263 = vmatmul.mubr.f32.gmra.mxu0 %v94
  %v264 = vpop.f32.mrf.mxu0
  %v265 = vadd.f32 %v51, %v264
  %v266 = vpop.f32.mrf.mxu0
  %267 = vmatprep.mubr.f32.mxu0 0.0
  %268 = vmatmul.mubr.f32.gmra.mxu0 %v97
  %v269 = vpop.f32.mrf.mxu0
  %v270 = vadd.f32 %v51, %v269
  %v271 = vpop.f32.mrf.mxu0
  %272 = vmatprep.mubr.f32.mxu0 0.0
  %273 = vmatmul.mubr.f32.gmra.mxu0 %v100
  %v274 = vpop.f32.mrf.mxu0
  %v275 = vadd.f32 %v51, %v274
  %v276 = vpop.f32.mrf.mxu0
  %277 = vmatprep.mubr.f32.mxu0 0.0
  %278 = vmatmul.mubr.f32.gmra.mxu0 %v103
  %v279 = vpop.f32.mrf.mxu0
  %v280 = vadd.f32 %v51, %v279
  %v281 = vpop.f32.mrf.mxu0
  %282 = vmatprep.mubr.f32.mxu0 0.0
  %283 = vmatmul.mubr.f32.gmra.mxu0 %v106
  %v284 = vpop.f32.mrf.mxu0
  %v285 = vadd.f32 %v51, %v284
  %v286 = vpop.f32.mrf.mxu0
  %287 = vmatprep.mubr.f32.mxu0 0.0
  %288 = vmatmul.mubr.f32.gmra.mxu0 %v109
  %v289 = vpop.f32.mrf.mxu0
  %v290 = vadd.f32 %v51, %v289
  %v291 = vpop.f32.mrf.mxu0
  %292 = vmatprep.mubr.f32.mxu0 0.0
  %293 = vmatmul.mubr.f32.gmra.mxu0 %v112
  %v294 = vpop.f32.mrf.mxu0
  %v295 = vadd.f32 %v51, %v294
  %v296 = vpop.f32.mrf.mxu0
  %297 = vmatprep.mubr.f32.mxu0 0.0
  %298 = vmatmul.mubr.f32.gmra.mxu0 %v115
  %v299 = vpop.f32.mrf.mxu0
  %v300 = vadd.f32 %v51, %v299
  %v301 = vpop.f32.mrf.mxu0
  %302 = vmatprep.mubr.f32.mxu0 0.0
  %303 = vmatmul.mubr.f32.gmra.mxu0 %v118
  %v304 = vpop.f32.mrf.mxu0
  %v305 = vadd.f32 %v51, %v304
  %v306 = vpop.f32.mrf.mxu0
  %307 = vmatprep.mubr.f32.mxu0 0.0
  %308 = vmatmul.mubr.f32.gmra.mxu0 %v121
  %v309 = vpop.f32.mrf.mxu0
  %v310 = vadd.f32 %v51, %v309
  %v311 = vpop.f32.mrf.mxu0
  %312 = vmatprep.mubr.f32.mxu0 0.0
  %313 = vmatmul.mubr.f32.gmra.mxu0 %v124
  %v314 = vpop.f32.mrf.mxu0
  %v315 = vadd.f32 %v51, %v314
  %v316 = vpop.f32.mrf.mxu0
  %317 = vmatprep.mubr.f32.mxu0 0.0
  %318 = vmatmul.mubr.f32.gmra.mxu0 %v127
  %v319 = vpop.f32.mrf.mxu0
  %v320 = vadd.f32 %v51, %v319
  %v321 = vpop.f32.mrf.mxu0
  %322 = vdwg.mxu0
  %v323 = vmax.f32 %v200, 0.0
  %v324 = vmax.f32 %v205, 0.0
  %v325 = vmax.f32 %v210, 0.0
  %v326 = vmax.f32 %v215, 0.0
  %v327 = vmax.f32 %v220, 0.0
  %v328 = vmax.f32 %v225, 0.0
  %v329 = vmax.f32 %v230, 0.0
  %v330 = vmax.f32 %v235, 0.0
  %v331 = vmax.f32 %v240, 0.0
  %v332 = vmax.f32 %v245, 0.0
  %v333 = vmax.f32 %v250, 0.0
  %v334 = vmax.f32 %v255, 0.0
  %v335 = vmax.f32 %v260, 0.0
  %v336 = vmax.f32 %v265, 0.0
  %v337 = vmax.f32 %v270, 0.0
  %v338 = vmax.f32 %v275, 0.0
  %v339 = vmax.f32 %v280, 0.0
  %v340 = vmax.f32 %v285, 0.0
  %v341 = vmax.f32 %v290, 0.0
  %v342 = vmax.f32 %v295, 0.0
  %v343 = vmax.f32 %v300, 0.0
  %v344 = vmax.f32 %v305, 0.0
  %v345 = vmax.f32 %v310, 0.0
  %v346 = vmax.f32 %v315, 0.0
  %v347 = vmax.f32 %v320, 0.0
  %v348 = vld [vmem:[%s3] sm:$0xf]
  %v349 = vld [vmem:[%s4] sm:$0x1]
  %v351 = vlaneseq
  %v352 = vshrl.u32 %v351, 7
  %v353 = vsub.s32 0, %v352
  %v354 = vrot.slane %v349, %v353
  %vm356 = vcmask 31744
  %v358 = vsel %vm356, %v323, 0
  %v361 = vsel %vm356, %v324, 0
  %v364 = vsel %vm356, %v325, 0
  %v367 = vsel %vm356, %v326, 0
  %v370 = vsel %vm356, %v327, 0
  %v373 = vsel %vm356, %v328, 0
  %v376 = vsel %vm356, %v329, 0
  %v379 = vsel %vm356, %v330, 0
  %v382 = vsel %vm356, %v331, 0
  %v385 = vsel %vm356, %v332, 0
  %v388 = vsel %vm356, %v333, 0
  %v391 = vsel %vm356, %v334, 0
  %v394 = vsel %vm356, %v335, 0
  %v397 = vsel %vm356, %v336, 0
  %v400 = vsel %vm356, %v337, 0
  %v403 = vsel %vm356, %v338, 0
  %v406 = vsel %vm356, %v339, 0
  %v409 = vsel %vm356, %v340, 0
  %v412 = vsel %vm356, %v341, 0
  %v415 = vsel %vm356, %v342, 0
  %v418 = vsel %vm356, %v343, 0
  %v421 = vsel %vm356, %v344, 0
  %v424 = vsel %vm356, %v345, 0
  %v427 = vsel %vm356, %v346, 0
  %v430 = vsel %vm356, %v347, 0
  %vm432 = vcmask 1043456
  %v434 = vsel %vm432, %v348, 0
  %436 = vmatprep.subr.mxu0 0.0
  %437 = vmatpush1.msra.mxu0 0.0
  %438 = vmatprep.subr.mxu0 0.0
  %439 = vmatpush1.msra.mxu0 0.0
  %440 = vmatprep.subr.mxu0 0.0
  %441 = vmatpush1.msra.mxu0 0.0
  %442 = vmatprep.subr.mxu0 0.0
  %443 = vmatpush1.msra.mxu0 0.0
  %444 = vmatprep.subr.mxu0 0.0
  %445 = vmatpush1.msra.mxu0 0.0
  %446 = vmatprep.subr.mxu0 0.0
  %447 = vmatpush1.msra.mxu0 0.0
  %448 = vmatprep.subr.mxu0 0.0
  %449 = vmatpush1.msra.mxu0 0.0
  %450 = vmatprep.subr.mxu0 0.0
  %451 = vmatpush1.msra.mxu0 0.0
  %452 = vmatprep.subr.mxu0 0.0
  %453 = vmatpush1.msra.mxu0 0.0
  %454 = vmatprep.subr.mxu0 0.0
  %455 = vmatpush1.msra.mxu0 0.0
  %456 = vmatprep.subr.mxu0 0.0
  %457 = vmatpush1.msra.mxu0 0.0
  %458 = vmatprep.subr.mxu0 0.0
  %459 = vmatpush1.msra.mxu0 0.0
  %460 = vmatprep.subr.mxu0 0.0
  %461 = vmatpush1.msra.mxu0 0.0
  %462 = vmatprep.subr.mxu0 0.0
  %463 = vmatpush1.msra.mxu0 0.0
  %464 = vmatprep.subr.mxu0 0.0
  %465 = vmatpush1.msra.mxu0 0.0
  %466 = vmatprep.subr.mxu0 0.0
  %467 = vmatpush1.msra.mxu0 %v434
  %468 = vmatprep.subr.mxu0 0.0
  %469 = vmatpush2.msra.mxu0 0.0
  %470 = vmatprep.subr.mxu0 0.0
  %471 = vmatpush2.msra.mxu0 0.0
  %472 = vmatprep.subr.mxu0 0.0
  %473 = vmatpush2.msra.mxu0 0.0
  %474 = vmatprep.subr.mxu0 0.0
  %475 = vmatpush2.msra.mxu0 0.0
  %476 = vmatprep.subr.mxu0 0.0
  %477 = vmatpush2.msra.mxu0 0.0
  %478 = vmatprep.subr.mxu0 0.0
  %479 = vmatpush2.msra.mxu0 0.0
  %480 = vmatprep.subr.mxu0 0.0
  %481 = vmatpush2.msra.mxu0 0.0
  %482 = vmatprep.subr.mxu0 0.0
  %483 = vmatpush2.msra.mxu0 0.0
  %484 = vmatprep.subr.mxu0 0.0
  %485 = vmatpush2.msra.mxu0 0.0
  %486 = vmatprep.subr.mxu0 0.0
  %487 = vmatpush2.msra.mxu0 0.0
  %488 = vmatprep.subr.mxu0 0.0
  %489 = vmatpush2.msra.mxu0 0.0
  %490 = vmatprep.subr.mxu0 0.0
  %491 = vmatpush2.msra.mxu0 0.0
  %492 = vmatprep.subr.mxu0 0.0
  %493 = vmatpush2.msra.mxu0 0.0
  %494 = vmatprep.subr.mxu0 0.0
  %495 = vmatpush2.msra.mxu0 0.0
  %496 = vmatprep.subr.mxu0 0.0
  %497 = vmatpush2.msra.mxu0 0.0
  %498 = vmatprep.subr.mxu0 0.0
  %499 = vmatpush2.msra.mxu0 0.0
  %500 = vmatprep.mubr.f32.mxu0 0.0
  %501 = vmatmul.mubr.f32.gmra.mxu0 %v358
  %v502 = vpop.f32.mrf.mxu0
  %v503 = vadd.f32 %v354, %v502
  %v504 = vpop.f32.mrf.mxu0
  %505 = vmatprep.mubr.f32.mxu0 0.0
  %506 = vmatmul.mubr.f32.gmra.mxu0 %v361
  %v507 = vpop.f32.mrf.mxu0
  %v508 = vadd.f32 %v354, %v507
  %v509 = vpop.f32.mrf.mxu0
  %510 = vmatprep.mubr.f32.mxu0 0.0
  %511 = vmatmul.mubr.f32.gmra.mxu0 %v364
  %v512 = vpop.f32.mrf.mxu0
  %v513 = vadd.f32 %v354, %v512
  %v514 = vpop.f32.mrf.mxu0
  %515 = vmatprep.mubr.f32.mxu0 0.0
  %516 = vmatmul.mubr.f32.gmra.mxu0 %v367
  %v517 = vpop.f32.mrf.mxu0
  %v518 = vadd.f32 %v354, %v517
  %v519 = vpop.f32.mrf.mxu0
  %520 = vmatprep.mubr.f32.mxu0 0.0
  %521 = vmatmul.mubr.f32.gmra.mxu0 %v370
  %v522 = vpop.f32.mrf.mxu0
  %v523 = vadd.f32 %v354, %v522
  %v524 = vpop.f32.mrf.mxu0
  %525 = vmatprep.mubr.f32.mxu0 0.0
  %526 = vmatmul.mubr.f32.gmra.mxu0 %v373
  %v527 = vpop.f32.mrf.mxu0
  %v528 = vadd.f32 %v354, %v527
  %v529 = vpop.f32.mrf.mxu0
  %530 = vmatprep.mubr.f32.mxu0 0.0
  %531 = vmatmul.mubr.f32.gmra.mxu0 %v376
  %v532 = vpop.f32.mrf.mxu0
  %v533 = vadd.f32 %v354, %v532
  %v534 = vpop.f32.mrf.mxu0
  %535 = vmatprep.mubr.f32.mxu0 0.0
  %536 = vmatmul.mubr.f32.gmra.mxu0 %v379
  %v537 = vpop.f32.mrf.mxu0
  %v538 = vadd.f32 %v354, %v537
  %v539 = vpop.f32.mrf.mxu0
  %540 = vmatprep.mubr.f32.mxu0 0.0
  %541 = vmatmul.mubr.f32.gmra.mxu0 %v382
  %v542 = vpop.f32.mrf.mxu0
  %v543 = vadd.f32 %v354, %v542
  %v544 = vpop.f32.mrf.mxu0
  %545 = vmatprep.mubr.f32.mxu0 0.0
  %546 = vmatmul.mubr.f32.gmra.mxu0 %v385
  %v547 = vpop.f32.mrf.mxu0
  %v548 = vadd.f32 %v354, %v547
  %v549 = vpop.f32.mrf.mxu0
  %550 = vmatprep.mubr.f32.mxu0 0.0
  %551 = vmatmul.mubr.f32.gmra.mxu0 %v388
  %v552 = vpop.f32.mrf.mxu0
  %v553 = vadd.f32 %v354, %v552
  %v554 = vpop.f32.mrf.mxu0
  %555 = vmatprep.mubr.f32.mxu0 0.0
  %556 = vmatmul.mubr.f32.gmra.mxu0 %v391
  %v557 = vpop.f32.mrf.mxu0
  %v558 = vadd.f32 %v354, %v557
  %v559 = vpop.f32.mrf.mxu0
  %560 = vmatprep.mubr.f32.mxu0 0.0
  %561 = vmatmul.mubr.f32.gmra.mxu0 %v394
  %v562 = vpop.f32.mrf.mxu0
  %v563 = vadd.f32 %v354, %v562
  %v564 = vpop.f32.mrf.mxu0
  %565 = vmatprep.mubr.f32.mxu0 0.0
  %566 = vmatmul.mubr.f32.gmra.mxu0 %v397
  %v567 = vpop.f32.mrf.mxu0
  %v568 = vadd.f32 %v354, %v567
  %v569 = vpop.f32.mrf.mxu0
  %570 = vmatprep.mubr.f32.mxu0 0.0
  %571 = vmatmul.mubr.f32.gmra.mxu0 %v400
  %v572 = vpop.f32.mrf.mxu0
  %v573 = vadd.f32 %v354, %v572
  %v574 = vpop.f32.mrf.mxu0
  %575 = vmatprep.mubr.f32.mxu0 0.0
  %576 = vmatmul.mubr.f32.gmra.mxu0 %v403
  %v577 = vpop.f32.mrf.mxu0
  %v578 = vadd.f32 %v354, %v577
  %v579 = vpop.f32.mrf.mxu0
  %580 = vmatprep.mubr.f32.mxu0 0.0
  %581 = vmatmul.mubr.f32.gmra.mxu0 %v406
  %v582 = vpop.f32.mrf.mxu0
  %v583 = vadd.f32 %v354, %v582
  %v584 = vpop.f32.mrf.mxu0
  %585 = vmatprep.mubr.f32.mxu0 0.0
  %586 = vmatmul.mubr.f32.gmra.mxu0 %v409
  %v587 = vpop.f32.mrf.mxu0
  %v588 = vadd.f32 %v354, %v587
  %v589 = vpop.f32.mrf.mxu0
  %590 = vmatprep.mubr.f32.mxu0 0.0
  %591 = vmatmul.mubr.f32.gmra.mxu0 %v412
  %v592 = vpop.f32.mrf.mxu0
  %v593 = vadd.f32 %v354, %v592
  %v594 = vpop.f32.mrf.mxu0
  %595 = vmatprep.mubr.f32.mxu0 0.0
  %596 = vmatmul.mubr.f32.gmra.mxu0 %v415
  %v597 = vpop.f32.mrf.mxu0
  %v598 = vadd.f32 %v354, %v597
  %v599 = vpop.f32.mrf.mxu0
  %600 = vmatprep.mubr.f32.mxu0 0.0
  %601 = vmatmul.mubr.f32.gmra.mxu0 %v418
  %v602 = vpop.f32.mrf.mxu0
  %v603 = vadd.f32 %v354, %v602
  %v604 = vpop.f32.mrf.mxu0
  %605 = vmatprep.mubr.f32.mxu0 0.0
  %606 = vmatmul.mubr.f32.gmra.mxu0 %v421
  %v607 = vpop.f32.mrf.mxu0
  %v608 = vadd.f32 %v354, %v607
  %v609 = vpop.f32.mrf.mxu0
  %610 = vmatprep.mubr.f32.mxu0 0.0
  %611 = vmatmul.mubr.f32.gmra.mxu0 %v424
  %v612 = vpop.f32.mrf.mxu0
  %v613 = vadd.f32 %v354, %v612
  %v614 = vpop.f32.mrf.mxu0
  %615 = vmatprep.mubr.f32.mxu0 0.0
  %616 = vmatmul.mubr.f32.gmra.mxu0 %v427
  %v617 = vpop.f32.mrf.mxu0
  %v618 = vadd.f32 %v354, %v617
  %v619 = vpop.f32.mrf.mxu0
  %620 = vmatprep.mubr.f32.mxu0 0.0
  %621 = vmatmul.mubr.f32.gmra.mxu0 %v430
  %v622 = vpop.f32.mrf.mxu0
  %v623 = vadd.f32 %v354, %v622
  %v624 = vpop.f32.mrf.mxu0
  %625 = vdwg.mxu0
  %vm626 = vcmask 23552
  %627 = vst.msk [vmem:[%s5] sm:$0xff] %vm626, %v503
  %628 = vst.msk [vmem:[%s5 + $0x8] sm:$0xff] %vm626, %v508
  %629 = vst.msk [vmem:[%s5 + $0x10] sm:$0xff] %vm626, %v513
  %630 = vst.msk [vmem:[%s5 + $0x18] sm:$0xff] %vm626, %v518
  %631 = vst.msk [vmem:[%s5 + $0x20] sm:$0xff] %vm626, %v523
  %632 = vst.msk [vmem:[%s5 + $0x28] sm:$0xff] %vm626, %v528
  %633 = vst.msk [vmem:[%s5 + $0x30] sm:$0xff] %vm626, %v533
  %634 = vst.msk [vmem:[%s5 + $0x38] sm:$0xff] %vm626, %v538
  %635 = vst.msk [vmem:[%s5 + $0x40] sm:$0xff] %vm626, %v543
  %636 = vst.msk [vmem:[%s5 + $0x48] sm:$0xff] %vm626, %v548
  %637 = vst.msk [vmem:[%s5 + $0x50] sm:$0xff] %vm626, %v553
  %638 = vst.msk [vmem:[%s5 + $0x58] sm:$0xff] %vm626, %v558
  %639 = vst.msk [vmem:[%s5 + $0x60] sm:$0xff] %vm626, %v563
  %640 = vst.msk [vmem:[%s5 + $0x68] sm:$0xff] %vm626, %v568
  %641 = vst.msk [vmem:[%s5 + $0x70] sm:$0xff] %vm626, %v573
  %642 = vst.msk [vmem:[%s5 + $0x78] sm:$0xff] %vm626, %v578
  %643 = vst.msk [vmem:[%s5 + $0x80] sm:$0xff] %vm626, %v583
  %644 = vst.msk [vmem:[%s5 + $0x88] sm:$0xff] %vm626, %v588
  %645 = vst.msk [vmem:[%s5 + $0x90] sm:$0xff] %vm626, %v593
  %646 = vst.msk [vmem:[%s5 + $0x98] sm:$0xff] %vm626, %v598
  %647 = vst.msk [vmem:[%s5 + $0xa0] sm:$0xff] %vm626, %v603
  %648 = vst.msk [vmem:[%s5 + $0xa8] sm:$0xff] %vm626, %v608
  %649 = vst.msk [vmem:[%s5 + $0xb0] sm:$0xff] %vm626, %v613
  %650 = vst.msk [vmem:[%s5 + $0xb8] sm:$0xff] %vm626, %v618
  %651 = vst.msk [vmem:[%s5 + $0xc0] sm:$0xff] %vm626, %v623
  // Predicated region
  $region22: #{tpu_custom_call.1} parent=0 // pred_check
    _
  $region23: #{tpu_custom_call.1} parent=0 // pred_check_branch
    %653 = sbr.rel (0) target = $region25
  $region24: #{tpu_custom_call.1} parent=0 // pred_region
    _
  $region25: #{tpu_custom_call.1} parent=0 // pred_fallthru
    _
  // Predicated region
  $region26: #{tpu_custom_call.1} parent=0 // pred_check
    _
  $region27: #{tpu_custom_call.1} parent=0 // pred_check_branch
    %655 = sbr.rel (0) target = $region29
  $region28: #{tpu_custom_call.1} parent=0 // pred_region
    _
  $region29: #{tpu_custom_call.1} parent=0 // pred_fallthru
    _

</llo_original>
